<compile_context>
chip_gen: v7x
topology: tpu7x:2x2x1
jax: 0.10.0
libtpu: 0.0.40
codegen_flags: <defaults>
</compile_context>

<pallas_src>
import functools

import jax
import jax.numpy as jnp
from jax.experimental import pallas as pl
from jax.experimental.pallas import tpu as pltpu


def _mlp_kernel(x_ref, w1_ref, b1_ref, w2_ref, b2_ref, w3_ref, b3_ref,
                w4_ref, b4_ref, o_ref):
    cdt = w1_ref.dtype  # compute dtype for MXU inputs (bf16 or f32)

    # fc1 + relu
    h = jnp.dot(x_ref[...], w1_ref[...], preferred_element_type=jnp.float32)
    h = jnp.maximum(h + b1_ref[...], 0.0)
    # fc2 + relu
    h = jnp.dot(h.astype(cdt), w2_ref[...], preferred_element_type=jnp.float32)
    h = jnp.maximum(h + b2_ref[...], 0.0)
    # fc3 + relu
    h = jnp.dot(h.astype(cdt), w3_ref[...], preferred_element_type=jnp.float32)
    h = jnp.maximum(h + b3_ref[...], 0.0)
    # fc4 (logits over 128 lane-dense classes; padded columns have bias -1e30)
    logits = jnp.dot(h.astype(cdt), w4_ref[...],
                     preferred_element_type=jnp.float32)
    logits = logits + b4_ref[...]
    # log_softmax over the class axis. Padded classes are -1e30 -> exp() == 0,
    # so the real 10-class softmax is unchanged.
    m = jnp.max(logits, axis=-1, keepdims=True)
    shifted = logits - m
    lse = jnp.log(jnp.sum(jnp.exp(shifted), axis=-1, keepdims=True))
    o_ref[...] = (shifted - lse).astype(o_ref.dtype)


def _round_up(n, m):
    return ((n + m - 1) // m) * m


@functools.partial(jax.jit, static_argnames=("block_b", "use_bf16"))
def net_forward(x, params, *, block_b=1024, use_bf16=True):
    """x: (B, 784) float32. params: w1..w4 as (in,out), b1..b4 as (1,out)."""
    B, D_in = x.shape
    n_out = params["w4"].shape[1]          # 10
    n_out_pad = max(128, _round_up(n_out, 128))

    compute_dtype = jnp.bfloat16 if use_bf16 else jnp.float32

    # Lane-dense output: pad the last layer to 128 classes. Padded columns get
    # weight 0 and bias -1e30 so they contribute exp(-huge)=0 to the softmax.
    w4 = jnp.pad(params["w4"], ((0, 0), (0, n_out_pad - n_out)))
    b4 = jnp.pad(params["b4"], ((0, 0), (0, n_out_pad - n_out)),
                 constant_values=-1e30)

    # Batch tiling: clamp the tile to the (8-aligned) batch, pad the batch to a
    # multiple of the tile so no ragged last tile is needed.
    block_b = _round_up(max(8, block_b), 8)
    block_b = min(block_b, _round_up(B, 8))
    B_pad = _round_up(B, block_b)
    if B_pad != B:
        x = jnp.pad(x, ((0, B_pad - B), (0, 0)))

    x_c = x.astype(compute_dtype)
    w1 = params["w1"].astype(compute_dtype)
    w2 = params["w2"].astype(compute_dtype)
    w3 = params["w3"].astype(compute_dtype)
    w4 = w4.astype(compute_dtype)
    b1, b2, b3 = params["b1"], params["b2"], params["b3"]  # keep f32
    # b4 stays f32 (holds -1e30 padding).

    def full_spec(shape):
        # Grid-invariant full-array block (weights / biases are tiny and
        # re-used every grid step, so Pallas skips re-DMA).
        return pl.BlockSpec(shape, lambda i: (0,) * len(shape))

    # Raise the scoped-VMEM limit only if the double-buffered tiles need it
    # (mainly very large f32 tiles on v5e's 16 MiB scoped default).
    itemsize = jnp.dtype(compute_dtype).itemsize
    weight_bytes = sum(int(w.size) * itemsize for w in (w1, w2, w3, w4))
    vmem_est = (2 * block_b * D_in * itemsize        # x, double-buffered
                + 2 * block_b * n_out_pad * 4        # out, double-buffered
                + 2 * weight_bytes + (256 << 10))
    compiler_kwargs = dict(dimension_semantics=("parallel",))
    if vmem_est > (12 << 20):
        compiler_kwargs["vmem_limit_bytes"] = min(
            int(1.5 * vmem_est) + (4 << 20), 100 << 20)

    grid = (B_pad // block_b,)
    out = pl.pallas_call(
        _mlp_kernel,
        out_shape=jax.ShapeDtypeStruct((B_pad, n_out_pad), jnp.float32),
        grid_spec=pltpu.PrefetchScalarGridSpec(
            num_scalar_prefetch=0,
            grid=grid,
            in_specs=[
                pl.BlockSpec((block_b, D_in), lambda i: (i, 0)),  # x tile
                full_spec(w1.shape), full_spec(b1.shape),
                full_spec(w2.shape), full_spec(b2.shape),
                full_spec(w3.shape), full_spec(b3.shape),
                full_spec(w4.shape), full_spec(b4.shape),
            ],
            out_specs=pl.BlockSpec((block_b, n_out_pad), lambda i: (i, 0)),
        ),
        compiler_params=pltpu.CompilerParams(**compiler_kwargs),
    )(x_c, w1, b1, w2, b2, w3, b3, w4, b4)

    return out[:B, :n_out]


def init_params(key):
    """Deterministic init mimicking PyTorch nn.Linear default (uniform +-1/sqrt(fan_in))."""
    dims = [(784, 64), (64, 64), (64, 64), (64, 10)]
    params = {}
    for idx, (fan_in, fan_out) in enumerate(dims, start=1):
        key, kw, kb = jax.random.split(key, 3)
        bound = 1.0 / jnp.sqrt(fan_in)
        # stored as (in, out) so the kernel does x @ w directly
        params[f"w{idx}"] = jax.random.uniform(
            kw, (fan_in, fan_out), jnp.float32, -bound, bound)
        params[f"b{idx}"] = jax.random.uniform(
            kb, (1, fan_out), jnp.float32, -bound, bound)
    return params


def reference_forward(x, params):
    h = x
    for i in range(1, 4):
        h = jnp.maximum(h @ params[f"w{i}"] + params[f"b{i}"], 0.0)
    logits = h @ params["w4"] + params["b4"]
    return jax.nn.log_softmax(logits, axis=1)


if __name__ == "__main__":
    key = jax.random.PRNGKey(0)
    kx, kp = jax.random.split(key)
    B = 32
    x = jax.random.normal(kx, (B, 784), jnp.float32)
    params = init_params(kp)
    ref = reference_forward(x, params)

    # f32 path: bit-level-close parity with the reference.
    out_f32 = jax.block_until_ready(net_forward(x, params, use_bf16=False))
    assert out_f32.shape == (B, 10)
    assert jnp.allclose(out_f32, ref, atol=1e-5, rtol=1e-5), "f32 mismatch"

    # bf16 fast path (halved HBM traffic, bf16 MXU); f32 accumulation keeps it
    # numerically sound, so a loose tolerance vs the f32 reference suffices.
    out_bf16 = jax.block_until_ready(net_forward(x, params, use_bf16=True))
    assert out_bf16.shape == (B, 10)
    assert jnp.allclose(out_bf16, ref, atol=7e-2, rtol=7e-2), "bf16 mismatch"

    print("KERNEL_OK")
</pallas_src>

<mosaic_0001>
module attributes {stable_mosaic.version = 11 : i64} {
  func.func @_mlp_kernel(%arg0: i32, %arg1: memref<32x784xf32, #tpu.memory_space<vmem>>, %arg2: memref<784x64xf32, #tpu.memory_space<vmem>>, %arg3: memref<1x64xf32, #tpu.memory_space<vmem>>, %arg4: memref<64x64xf32, #tpu.memory_space<vmem>>, %arg5: memref<1x64xf32, #tpu.memory_space<vmem>>, %arg6: memref<64x64xf32, #tpu.memory_space<vmem>>, %arg7: memref<1x64xf32, #tpu.memory_space<vmem>>, %arg8: memref<64x128xf32, #tpu.memory_space<vmem>>, %arg9: memref<1x128xf32, #tpu.memory_space<vmem>>, %arg10: memref<32x128xf32, #tpu.memory_space<vmem>>) attributes {dimension_semantics = [#tpu.dimension_semantics<parallel>], iteration_bounds = array<i64: 1>, scalar_prefetch = 0 : i64, scratch_operands = 0 : i64, tpu.core_type = #tpu.core_type<tc>, window_params = [{transform_indices = @transform_0, window_bounds = array<i64: 32, 784>}, {pipeline_mode = #tpu.pipeline_mode<synchronous>, transform_indices = @transform_1, window_bounds = array<i64: 784, 64>}, {pipeline_mode = #tpu.pipeline_mode<synchronous>, transform_indices = @transform_2, window_bounds = array<i64: 1, 64>}, {pipeline_mode = #tpu.pipeline_mode<synchronous>, transform_indices = @transform_3, window_bounds = array<i64: 64, 64>}, {pipeline_mode = #tpu.pipeline_mode<synchronous>, transform_indices = @transform_4, window_bounds = array<i64: 1, 64>}, {pipeline_mode = #tpu.pipeline_mode<synchronous>, transform_indices = @transform_5, window_bounds = array<i64: 64, 64>}, {pipeline_mode = #tpu.pipeline_mode<synchronous>, transform_indices = @transform_6, window_bounds = array<i64: 1, 64>}, {pipeline_mode = #tpu.pipeline_mode<synchronous>, transform_indices = @transform_7, window_bounds = array<i64: 64, 128>}, {pipeline_mode = #tpu.pipeline_mode<synchronous>, transform_indices = @transform_8, window_bounds = array<i64: 1, 128>}, {transform_indices = @transform_9, window_bounds = array<i64: 32, 128>}]} {
    %c0 = arith.constant 0 : index
    %c0_0 = arith.constant 0 : index
    %0 = vector.load %arg1[%c0, %c0_0] : memref<32x784xf32, #tpu.memory_space<vmem>>, vector<32x784xf32>
    %c0_1 = arith.constant 0 : index
    %c0_2 = arith.constant 0 : index
    %1 = vector.load %arg2[%c0_1, %c0_2] : memref<784x64xf32, #tpu.memory_space<vmem>>, vector<784x64xf32>
    %cst = arith.constant dense<0.000000e+00> : vector<32x64xf32>
    %2 = tpu.matmul %0, %1, %cst {dimension_numbers = #tpu.dot_dimension_numbers<[1], [0], [0], [1], [0, 0, 1, 1], [], []>} : vector<32x784xf32>, vector<784x64xf32>, vector<32x64xf32> -> vector<32x64xf32>
    %c0_3 = arith.constant 0 : index
    %c0_4 = arith.constant 0 : index
    %3 = vector.load %arg3[%c0_3, %c0_4] : memref<1x64xf32, #tpu.memory_space<vmem>>, vector<1x64xf32>
    %4 = vector.broadcast %3 : vector<1x64xf32> to vector<32x64xf32>
    %5 = arith.addf %2, %4 : vector<32x64xf32>
    %cst_5 = arith.constant 0.000000e+00 : f32
    %6 = vector.broadcast %cst_5 : f32 to vector<32x64xf32>
    %7 = arith.maximumf %5, %6 : vector<32x64xf32>
    %c0_6 = arith.constant 0 : index
    %c0_7 = arith.constant 0 : index
    %8 = vector.load %arg4[%c0_6, %c0_7] : memref<64x64xf32, #tpu.memory_space<vmem>>, vector<64x64xf32>
    %cst_8 = arith.constant dense<0.000000e+00> : vector<32x64xf32>
    %9 = tpu.matmul %7, %8, %cst_8 {dimension_numbers = #tpu.dot_dimension_numbers<[1], [0], [0], [1], [0, 0, 1, 1], [], []>} : vector<32x64xf32>, vector<64x64xf32>, vector<32x64xf32> -> vector<32x64xf32>
    %c0_9 = arith.constant 0 : index
    %c0_10 = arith.constant 0 : index
    %10 = vector.load %arg5[%c0_9, %c0_10] : memref<1x64xf32, #tpu.memory_space<vmem>>, vector<1x64xf32>
    %11 = vector.broadcast %10 : vector<1x64xf32> to vector<32x64xf32>
    %12 = arith.addf %9, %11 : vector<32x64xf32>
    %cst_11 = arith.constant 0.000000e+00 : f32
    %13 = vector.broadcast %cst_11 : f32 to vector<32x64xf32>
    %14 = arith.maximumf %12, %13 : vector<32x64xf32>
    %c0_12 = arith.constant 0 : index
    %c0_13 = arith.constant 0 : index
    %15 = vector.load %arg6[%c0_12, %c0_13] : memref<64x64xf32, #tpu.memory_space<vmem>>, vector<64x64xf32>
    %cst_14 = arith.constant dense<0.000000e+00> : vector<32x64xf32>
    %16 = tpu.matmul %14, %15, %cst_14 {dimension_numbers = #tpu.dot_dimension_numbers<[1], [0], [0], [1], [0, 0, 1, 1], [], []>} : vector<32x64xf32>, vector<64x64xf32>, vector<32x64xf32> -> vector<32x64xf32>
    %c0_15 = arith.constant 0 : index
    %c0_16 = arith.constant 0 : index
    %17 = vector.load %arg7[%c0_15, %c0_16] : memref<1x64xf32, #tpu.memory_space<vmem>>, vector<1x64xf32>
    %18 = vector.broadcast %17 : vector<1x64xf32> to vector<32x64xf32>
    %19 = arith.addf %16, %18 : vector<32x64xf32>
    %cst_17 = arith.constant 0.000000e+00 : f32
    %20 = vector.broadcast %cst_17 : f32 to vector<32x64xf32>
    %21 = arith.maximumf %19, %20 : vector<32x64xf32>
    %c0_18 = arith.constant 0 : index
    %c0_19 = arith.constant 0 : index
    %22 = vector.load %arg8[%c0_18, %c0_19] : memref<64x128xf32, #tpu.memory_space<vmem>>, vector<64x128xf32>
    %cst_20 = arith.constant dense<0.000000e+00> : vector<32x128xf32>
    %23 = tpu.matmul %21, %22, %cst_20 {dimension_numbers = #tpu.dot_dimension_numbers<[1], [0], [0], [1], [0, 0, 1, 1], [], []>} : vector<32x64xf32>, vector<64x128xf32>, vector<32x128xf32> -> vector<32x128xf32>
    %c0_21 = arith.constant 0 : index
    %c0_22 = arith.constant 0 : index
    %24 = vector.load %arg9[%c0_21, %c0_22] : memref<1x128xf32, #tpu.memory_space<vmem>>, vector<1x128xf32>
    %25 = vector.broadcast %24 : vector<1x128xf32> to vector<32x128xf32>
    %26 = arith.addf %23, %25 : vector<32x128xf32>
    %cst_23 = arith.constant dense<0xFF800000> : vector<32xf32>
    %27 = vector.multi_reduction <maximumf>, %26, %cst_23 [1] : vector<32x128xf32> to vector<32xf32>
    %28 = vector.shape_cast %27 : vector<32xf32> to vector<32x1xf32>
    %29 = vector.broadcast %28 : vector<32x1xf32> to vector<32x128xf32>
    %30 = arith.subf %26, %29 : vector<32x128xf32>
    %31 = math.exp %30 : vector<32x128xf32>
    %cst_24 = arith.constant dense<0.000000e+00> : vector<32xf32>
    %32 = vector.multi_reduction <add>, %31, %cst_24 [1] : vector<32x128xf32> to vector<32xf32>
    %33 = vector.shape_cast %32 : vector<32xf32> to vector<32x1xf32>
    %34 = math.log %33 : vector<32x1xf32>
    %35 = vector.broadcast %34 : vector<32x1xf32> to vector<32x128xf32>
    %36 = arith.subf %30, %35 : vector<32x128xf32>
    %c0_25 = arith.constant 0 : index
    %c0_26 = arith.constant 0 : index
    %37 = vector.load %arg10[%c0_25, %c0_26] : memref<32x128xf32, #tpu.memory_space<vmem>>, vector<32x128xf32>
    tpu.vector_store %arg10[%c0_25, %c0_26], %36 {strides = array<i32>} : memref<32x128xf32, #tpu.memory_space<vmem>>, vector<32x128xf32>,
    return
  }
  func.func @transform_0(%arg0: i32) -> (i32, i32) {
    %c0_i32 = arith.constant 0 : i32
    %c0_i32_0 = arith.constant 0 : i32
    return %arg0, %c0_i32 : i32, i32
  }
  func.func @transform_1(%arg0: i32) -> (i32, i32) {
    %c0_i32 = arith.constant 0 : i32
    %c0_i32_0 = arith.constant 0 : i32
    %c0_i32_1 = arith.constant 0 : i32
    return %c0_i32, %c0_i32_0 : i32, i32
  }
  func.func @transform_2(%arg0: i32) -> (i32, i32) {
    %c0_i32 = arith.constant 0 : i32
    %c0_i32_0 = arith.constant 0 : i32
    %c0_i32_1 = arith.constant 0 : i32
    return %c0_i32, %c0_i32_0 : i32, i32
  }
  func.func @transform_3(%arg0: i32) -> (i32, i32) {
    %c0_i32 = arith.constant 0 : i32
    %c0_i32_0 = arith.constant 0 : i32
    %c0_i32_1 = arith.constant 0 : i32
    return %c0_i32, %c0_i32_0 : i32, i32
  }
  func.func @transform_4(%arg0: i32) -> (i32, i32) {
    %c0_i32 = arith.constant 0 : i32
    %c0_i32_0 = arith.constant 0 : i32
    %c0_i32_1 = arith.constant 0 : i32
    return %c0_i32, %c0_i32_0 : i32, i32
  }
  func.func @transform_5(%arg0: i32) -> (i32, i32) {
    %c0_i32 = arith.constant 0 : i32
    %c0_i32_0 = arith.constant 0 : i32
    %c0_i32_1 = arith.constant 0 : i32
    return %c0_i32, %c0_i32_0 : i32, i32
  }
  func.func @transform_6(%arg0: i32) -> (i32, i32) {
    %c0_i32 = arith.constant 0 : i32
    %c0_i32_0 = arith.constant 0 : i32
    %c0_i32_1 = arith.constant 0 : i32
    return %c0_i32, %c0_i32_0 : i32, i32
  }
  func.func @transform_7(%arg0: i32) -> (i32, i32) {
    %c0_i32 = arith.constant 0 : i32
    %c0_i32_0 = arith.constant 0 : i32
    %c0_i32_1 = arith.constant 0 : i32
    return %c0_i32, %c0_i32_0 : i32, i32
  }
  func.func @transform_8(%arg0: i32) -> (i32, i32) {
    %c0_i32 = arith.constant 0 : i32
    %c0_i32_0 = arith.constant 0 : i32
    %c0_i32_1 = arith.constant 0 : i32
    return %c0_i32, %c0_i32_0 : i32, i32
  }
  func.func @transform_9(%arg0: i32) -> (i32, i32) {
    %c0_i32 = arith.constant 0 : i32
    %c0_i32_0 = arith.constant 0 : i32
    return %arg0, %c0_i32 : i32, i32
  }
}

</mosaic_0001>

<llo_original>
// kernel: net_forward.1
$region0: #{net_forward.1}
  #allocation0 [shape = 'u32[]', space=smem, size = 0x4, offset = 0x4, fixed_abs, tag = 'smem constant byte address 0x4 - core index']
  #allocation1 [shape = 'u32[144,128]{1,0:T(1,128)}', space=vmem, size = 0x12000, scoped, tag = 'internal scratch']
  %s0 = inlined_call_operand.vmem [shape: f32[32,784], index: 0, kind: input, shape index: {}]
  %s1 = inlined_call_operand.vmem [shape: f32[784,64], index: 1, kind: input, shape index: {}]
  %s2 = inlined_call_operand.vmem [shape: f32[1,64], index: 2, kind: input, shape index: {}]
  %s3 = inlined_call_operand.vmem [shape: f32[64,64], index: 3, kind: input, shape index: {}]
  %s4 = inlined_call_operand.vmem [shape: f32[1,64], index: 4, kind: input, shape index: {}]
  %s5 = inlined_call_operand.vmem [shape: f32[64,64], index: 5, kind: input, shape index: {}]
  %s6 = inlined_call_operand.vmem [shape: f32[1,64], index: 6, kind: input, shape index: {}]
  %s7 = inlined_call_operand.vmem [shape: f32[64,128], index: 7, kind: input, shape index: {}]
  %s8 = inlined_call_operand.vmem [shape: f32[1,128], index: 8, kind: input, shape index: {}]
  %s9 = inlined_call_operand.vmem [shape: f32[32,128], index: 9, kind: output, shape index: {}]
  %s10 = sld [smem:[#allocation0]]
  $region46: #{net_forward.1} parent=0
    _
  %s12 = ssub.s32 1, %s10
  %s13 = scalar_select 0, %s12, %s10
  // Predicated region
  $region2: #{net_forward.1} parent=0 // pred_check
    _
  $region3: #{net_forward.1} parent=0 // pred_check_branch
    %15 = sbr.rel (0) target = $region5
  $region4: #{net_forward.1} parent=0 // pred_region
    _
  $region5: #{net_forward.1} parent=0 // pred_fallthru
    _
  // Predicated region
  $region6: #{net_forward.1} parent=0 // pred_check
    _
  $region7: #{net_forward.1} parent=0 // pred_check_branch
    %17 = sbr.rel (0) target = $region9
  $region8: #{net_forward.1} parent=0 // pred_region
    _
  $region9: #{net_forward.1} parent=0 // pred_fallthru
    _
  // Predicated region
  $region10: #{net_forward.1} parent=0 // pred_check
    _
  $region11: #{net_forward.1} parent=0 // pred_check_branch
    %19 = sbr.rel (0) target = $region13
  $region12: #{net_forward.1} parent=0 // pred_region
    _
  $region13: #{net_forward.1} parent=0 // pred_fallthru
    _
  // Predicated region
  $region14: #{net_forward.1} parent=0 // pred_check
    _
  $region15: #{net_forward.1} parent=0 // pred_check_branch
    %21 = sbr.rel (0) target = $region17
  $region16: #{net_forward.1} parent=0 // pred_region
    _
  $region17: #{net_forward.1} parent=0 // pred_fallthru
    _
  // Predicated region
  $region18: #{net_forward.1} parent=0 // pred_check
    _
  $region19: #{net_forward.1} parent=0 // pred_check_branch
    %23 = sbr.rel (0) target = $region21
  $region20: #{net_forward.1} parent=0 // pred_region
    _
  $region21: #{net_forward.1} parent=0 // pred_fallthru
    _
  // Predicated region
  $region22: #{net_forward.1} parent=0 // pred_check
    _
  $region23: #{net_forward.1} parent=0 // pred_check_branch
    %25 = sbr.rel (0) target = $region25
  $region24: #{net_forward.1} parent=0 // pred_region
    _
  $region25: #{net_forward.1} parent=0 // pred_fallthru
    _
  // Predicated region
  $region26: #{net_forward.1} parent=0 // pred_check
    _
  $region27: #{net_forward.1} parent=0 // pred_check_branch
    %27 = sbr.rel (0) target = $region29
  $region28: #{net_forward.1} parent=0 // pred_region
    _
  $region29: #{net_forward.1} parent=0 // pred_fallthru
    _
  // Predicated region
  $region30: #{net_forward.1} parent=0 // pred_check
    _
  $region31: #{net_forward.1} parent=0 // pred_check_branch
    %29 = sbr.rel (0) target = $region33
  $region32: #{net_forward.1} parent=0 // pred_region
    _
  $region33: #{net_forward.1} parent=0 // pred_fallthru
    _
  // Predicated region
  $region34: #{net_forward.1} parent=0 // pred_check
    _
  $region35: #{net_forward.1} parent=0 // pred_check_branch
    %31 = sbr.rel (0) target = $region37
  $region36: #{net_forward.1} parent=0 // pred_region
    _
  $region37: #{net_forward.1} parent=0 // pred_fallthru
    _
  %v32 = vld [vmem:[%s0] sm:$0xff]
  %v33 = vld [vmem:[%s0 + $0x8] sm:$0xff]
  %v34 = vld [vmem:[%s0 + $0x10] sm:$0xff]
  %v35 = vld [vmem:[%s0 + $0x18] sm:$0xff]
  %v36 = vld [vmem:[%s0 + $0x20] sm:$0xff]
  %v37 = vld [vmem:[%s0 + $0x28] sm:$0xff]
  %v38 = vld [vmem:[%s0 + $0x30] sm:$0xff]
  %v39 = vld [vmem:[%s0 + $0x38] sm:$0xff]
  %v40 = vld [vmem:[%s0 + $0x40] sm:$0xff]
  %v41 = vld [vmem:[%s0 + $0x48] sm:$0xff]
  %v42 = vld [vmem:[%s0 + $0x50] sm:$0xff]
  %v43 = vld [vmem:[%s0 + $0x58] sm:$0xff]
  %v44 = vld [vmem:[%s0 + $0x60] sm:$0xff]
  %v45 = vld [vmem:[%s0 + $0x68] sm:$0xff]
  %v46 = vld [vmem:[%s0 + $0x70] sm:$0xff]
  %v47 = vld [vmem:[%s0 + $0x78] sm:$0xff]
  %v48 = vld [vmem:[%s0 + $0x80] sm:$0xff]
  %v49 = vld [vmem:[%s0 + $0x88] sm:$0xff]
  %v50 = vld [vmem:[%s0 + $0x90] sm:$0xff]
  %v51 = vld [vmem:[%s0 + $0x98] sm:$0xff]
  %v52 = vld [vmem:[%s0 + $0xa0] sm:$0xff]
  %v53 = vld [vmem:[%s0 + $0xa8] sm:$0xff]
  %v54 = vld [vmem:[%s0 + $0xb0] sm:$0xff]
  %v55 = vld [vmem:[%s0 + $0xb8] sm:$0xff]
  %v56 = vld [vmem:[%s0 + $0xc0] sm:$0xff]
  %v57 = vld [vmem:[%s0 + $0xc8] sm:$0xff]
  %v58 = vld [vmem:[%s0 + $0xd0] sm:$0xff]
  %v59 = vld [vmem:[%s0 + $0xd8] sm:$0xff]
  %v60 = vld [vmem:[%s1] sm:$0xff]
  %v61 = vld [vmem:[%s1 + $0x8] sm:$0xff]
  %v62 = vld [vmem:[%s1 + $0x10] sm:$0xff]
  %v63 = vld [vmem:[%s1 + $0x18] sm:$0xff]
  %v64 = vld [vmem:[%s1 + $0x20] sm:$0xff]
  %v65 = vld [vmem:[%s1 + $0x28] sm:$0xff]
  %v66 = vld [vmem:[%s1 + $0x30] sm:$0xff]
  %v67 = vld [vmem:[%s1 + $0x38] sm:$0xff]
  %v68 = vld [vmem:[%s1 + $0x40] sm:$0xff]
  %v69 = vld [vmem:[%s1 + $0x48] sm:$0xff]
  %v70 = vld [vmem:[%s1 + $0x50] sm:$0xff]
  %v71 = vld [vmem:[%s1 + $0x58] sm:$0xff]
  %v72 = vld [vmem:[%s1 + $0x60] sm:$0xff]
  %v73 = vld [vmem:[%s1 + $0x68] sm:$0xff]
  %v74 = vld [vmem:[%s1 + $0x70] sm:$0xff]
  %v75 = vld [vmem:[%s1 + $0x78] sm:$0xff]
  %v76 = vld [vmem:[%s1 + $0x80] sm:$0xff]
  %v77 = vld [vmem:[%s1 + $0x88] sm:$0xff]
  %v78 = vld [vmem:[%s1 + $0x90] sm:$0xff]
  %v79 = vld [vmem:[%s1 + $0x98] sm:$0xff]
  %v80 = vld [vmem:[%s1 + $0xa0] sm:$0xff]
  %v81 = vld [vmem:[%s1 + $0xa8] sm:$0xff]
  %v82 = vld [vmem:[%s1 + $0xb0] sm:$0xff]
  %v83 = vld [vmem:[%s1 + $0xb8] sm:$0xff]
  %v84 = vld [vmem:[%s1 + $0xc0] sm:$0xff]
  %v85 = vld [vmem:[%s1 + $0xc8] sm:$0xff]
  %v86 = vld [vmem:[%s1 + $0xd0] sm:$0xff]
  %v87 = vld [vmem:[%s1 + $0xd8] sm:$0xff]
  %v88 = vld [vmem:[%s1 + $0xe0] sm:$0xff]
  %v89 = vld [vmem:[%s1 + $0xe8] sm:$0xff]
  %v90 = vld [vmem:[%s1 + $0xf0] sm:$0xff]
  %v91 = vld [vmem:[%s1 + $0xf8] sm:$0xff]
  %v92 = vld [vmem:[%s1 + $0x100] sm:$0xff]
  %v93 = vld [vmem:[%s1 + $0x108] sm:$0xff]
  %v94 = vld [vmem:[%s1 + $0x110] sm:$0xff]
  %v95 = vld [vmem:[%s1 + $0x118] sm:$0xff]
  %v96 = vld [vmem:[%s1 + $0x120] sm:$0xff]
  %v97 = vld [vmem:[%s1 + $0x128] sm:$0xff]
  %v98 = vld [vmem:[%s1 + $0x130] sm:$0xff]
  %v99 = vld [vmem:[%s1 + $0x138] sm:$0xff]
  %v100 = vld [vmem:[%s1 + $0x140] sm:$0xff]
  %v101 = vld [vmem:[%s1 + $0x148] sm:$0xff]
  %v102 = vld [vmem:[%s1 + $0x150] sm:$0xff]
  %v103 = vld [vmem:[%s1 + $0x158] sm:$0xff]
  %v104 = vld [vmem:[%s1 + $0x160] sm:$0xff]
  %v105 = vld [vmem:[%s1 + $0x168] sm:$0xff]
  %v106 = vld [vmem:[%s1 + $0x170] sm:$0xff]
  %v107 = vld [vmem:[%s1 + $0x178] sm:$0xff]
  %v108 = vld [vmem:[%s1 + $0x180] sm:$0xff]
  %v109 = vld [vmem:[%s1 + $0x188] sm:$0xff]
  %v110 = vld [vmem:[%s1 + $0x190] sm:$0xff]
  %v111 = vld [vmem:[%s1 + $0x198] sm:$0xff]
  %v112 = vld [vmem:[%s1 + $0x1a0] sm:$0xff]
  %v113 = vld [vmem:[%s1 + $0x1a8] sm:$0xff]
  %v114 = vld [vmem:[%s1 + $0x1b0] sm:$0xff]
  %v115 = vld [vmem:[%s1 + $0x1b8] sm:$0xff]
  %v116 = vld [vmem:[%s1 + $0x1c0] sm:$0xff]
  %v117 = vld [vmem:[%s1 + $0x1c8] sm:$0xff]
  %v118 = vld [vmem:[%s1 + $0x1d0] sm:$0xff]
  %v119 = vld [vmem:[%s1 + $0x1d8] sm:$0xff]
  %v120 = vld [vmem:[%s1 + $0x1e0] sm:$0xff]
  %v121 = vld [vmem:[%s1 + $0x1e8] sm:$0xff]
  %v122 = vld [vmem:[%s1 + $0x1f0] sm:$0xff]
  %v123 = vld [vmem:[%s1 + $0x1f8] sm:$0xff]
  %v124 = vld [vmem:[%s1 + $0x200] sm:$0xff]
  %v125 = vld [vmem:[%s1 + $0x208] sm:$0xff]
  %v126 = vld [vmem:[%s1 + $0x210] sm:$0xff]
  %v127 = vld [vmem:[%s1 + $0x218] sm:$0xff]
  %v128 = vld [vmem:[%s1 + $0x220] sm:$0xff]
  %v129 = vld [vmem:[%s1 + $0x228] sm:$0xff]
  %v130 = vld [vmem:[%s1 + $0x230] sm:$0xff]
  %v131 = vld [vmem:[%s1 + $0x238] sm:$0xff]
  %v132 = vld [vmem:[%s1 + $0x240] sm:$0xff]
  %v133 = vld [vmem:[%s1 + $0x248] sm:$0xff]
  %v134 = vld [vmem:[%s1 + $0x250] sm:$0xff]
  %v135 = vld [vmem:[%s1 + $0x258] sm:$0xff]
  %v136 = vld [vmem:[%s1 + $0x260] sm:$0xff]
  %v137 = vld [vmem:[%s1 + $0x268] sm:$0xff]
  %v138 = vld [vmem:[%s1 + $0x270] sm:$0xff]
  %v139 = vld [vmem:[%s1 + $0x278] sm:$0xff]
  %v140 = vld [vmem:[%s1 + $0x280] sm:$0xff]
  %v141 = vld [vmem:[%s1 + $0x288] sm:$0xff]
  %v142 = vld [vmem:[%s1 + $0x290] sm:$0xff]
  %v143 = vld [vmem:[%s1 + $0x298] sm:$0xff]
  %v144 = vld [vmem:[%s1 + $0x2a0] sm:$0xff]
  %v145 = vld [vmem:[%s1 + $0x2a8] sm:$0xff]
  %v146 = vld [vmem:[%s1 + $0x2b0] sm:$0xff]
  %v147 = vld [vmem:[%s1 + $0x2b8] sm:$0xff]
  %v148 = vld [vmem:[%s1 + $0x2c0] sm:$0xff]
  %v149 = vld [vmem:[%s1 + $0x2c8] sm:$0xff]
  %v150 = vld [vmem:[%s1 + $0x2d0] sm:$0xff]
  %v151 = vld [vmem:[%s1 + $0x2d8] sm:$0xff]
  %v152 = vld [vmem:[%s1 + $0x2e0] sm:$0xff]
  %v153 = vld [vmem:[%s1 + $0x2e8] sm:$0xff]
  %v154 = vld [vmem:[%s1 + $0x2f0] sm:$0xff]
  %v155 = vld [vmem:[%s1 + $0x2f8] sm:$0xff]
  %v156 = vld [vmem:[%s1 + $0x300] sm:$0xff]
  %v157 = vld [vmem:[%s1 + $0x308] sm:$0xff]
  %v158 = vld [vmem:[%s2] sm:$0x1]
  %v160 = vlaneseq
  %v161 = vshrl.u32 %v160, 7
  %v162 = vsub.s32 0, %v161
  %v163 = vrot.slane %v158, %v162
  %vm165 = vcmask 130048
  %v167 = vsel %vm165, %v38, 0
  %v170 = vsel %vm165, %v45, 0
  %v173 = vsel %vm165, %v52, 0
  %v176 = vsel %vm165, %v59, 0
  %178 = vmatprep.subr.mxu0 0.0
  %179 = vmatpush1.msra.mxu0 %v60
  %180 = vmatprep.subr.mxu0 0.0
  %181 = vmatpush1.msra.mxu0 %v61
  %182 = vmatprep.subr.mxu0 0.0
  %183 = vmatpush1.msra.mxu0 %v62
  %184 = vmatprep.subr.mxu0 0.0
  %185 = vmatpush1.msra.mxu0 %v63
  %186 = vmatprep.subr.mxu0 0.0
  %187 = vmatpush1.msra.mxu0 %v64
  %188 = vmatprep.subr.mxu0 0.0
  %189 = vmatpush1.msra.mxu0 %v65
  %190 = vmatprep.subr.mxu0 0.0
  %191 = vmatpush1.msra.mxu0 %v66
  %192 = vmatprep.subr.mxu0 0.0
  %193 = vmatpush1.msra.mxu0 %v67
  %194 = vmatprep.subr.mxu0 0.0
  %195 = vmatpush1.msra.mxu0 %v68
  %196 = vmatprep.subr.mxu0 0.0
  %197 = vmatpush1.msra.mxu0 %v69
  %198 = vmatprep.subr.mxu0 0.0
  %199 = vmatpush1.msra.mxu0 %v70
  %200 = vmatprep.subr.mxu0 0.0
  %201 = vmatpush1.msra.mxu0 %v71
  %202 = vmatprep.subr.mxu0 0.0
  %203 = vmatpush1.msra.mxu0 %v72
  %204 = vmatprep.subr.mxu0 0.0
  %205 = vmatpush1.msra.mxu0 %v73
  %206 = vmatprep.subr.mxu0 0.0
  %207 = vmatpush1.msra.mxu0 %v74
  %208 = vmatprep.subr.mxu0 0.0
  %209 = vmatpush1.msra.mxu0 %v75
  %210 = vmatprep.subr.mxu0 0.0
  %211 = vmatpush1.msra.mxu0 %v76
  %212 = vmatprep.subr.mxu0 0.0
  %213 = vmatpush1.msra.mxu0 %v77
  %214 = vmatprep.subr.mxu0 0.0
  %215 = vmatpush1.msra.mxu0 %v78
  %216 = vmatprep.subr.mxu0 0.0
  %217 = vmatpush1.msra.mxu0 %v79
  %218 = vmatprep.subr.mxu0 0.0
  %219 = vmatpush1.msra.mxu0 %v80
  %220 = vmatprep.subr.mxu0 0.0
  %221 = vmatpush1.msra.mxu0 %v81
  %222 = vmatprep.subr.mxu0 0.0
  %223 = vmatpush1.msra.mxu0 %v82
  %224 = vmatprep.subr.mxu0 0.0
  %225 = vmatpush1.msra.mxu0 %v83
  %226 = vmatprep.subr.mxu0 0.0
  %227 = vmatpush1.msra.mxu0 %v84
  %228 = vmatprep.subr.mxu0 0.0
  %229 = vmatpush1.msra.mxu0 %v85
  %230 = vmatprep.subr.mxu0 0.0
  %231 = vmatpush1.msra.mxu0 %v86
  %232 = vmatprep.subr.mxu0 0.0
  %233 = vmatpush1.msra.mxu0 %v87
  %234 = vmatprep.subr.mxu0 0.0
  %235 = vmatpush1.msra.mxu0 %v88
  %236 = vmatprep.subr.mxu0 0.0
  %237 = vmatpush1.msra.mxu0 %v89
  %238 = vmatprep.subr.mxu0 0.0
  %239 = vmatpush1.msra.mxu0 %v90
  %240 = vmatprep.subr.mxu0 0.0
  %241 = vmatpush1.msra.mxu0 %v91
  %242 = vmatprep.mubr.f32.mxu0 %v33
  %243 = vmatmul.mubr.f32.gmra.mrb[0].mxu0 %v32
  %v244 = vpop.f32.mrb[0].mxu0
  %v245 = vadd.f32 %v163, %v244
  %v246 = vpop.f32.mrb[0].mxu0
  %247 = vmatprep.mubr.f32.mxu0 %v40
  %248 = vmatmul.mubr.f32.gmra.mrb[0].mxu0 %v39
  %v249 = vpop.f32.mrb[0].mxu0
  %v250 = vadd.f32 %v163, %v249
  %v251 = vpop.f32.mrb[0].mxu0
  %252 = vmatprep.mubr.f32.mxu0 %v47
  %253 = vmatmul.mubr.f32.gmra.mrb[0].mxu0 %v46
  %v254 = vpop.f32.mrb[0].mxu0
  %v255 = vadd.f32 %v163, %v254
  %v256 = vpop.f32.mrb[0].mxu0
  %257 = vmatprep.mubr.f32.mxu0 %v54
  %258 = vmatmul.mubr.f32.gmra.mrb[0].mxu0 %v53
  %v259 = vpop.f32.mrb[0].mxu0
  %v260 = vadd.f32 %v163, %v259
  %v261 = vpop.f32.mrb[0].mxu0
  %262 = vdwg.mxu0
  %263 = vmatprep.subr.mxu0 0.0
  %264 = vmatpush1.msra.mxu0 %v92
  %265 = vmatprep.subr.mxu0 0.0
  %266 = vmatpush1.msra.mxu0 %v93
  %267 = vmatprep.subr.mxu0 0.0
  %268 = vmatpush1.msra.mxu0 %v94
  %269 = vmatprep.subr.mxu0 0.0
  %270 = vmatpush1.msra.mxu0 %v95
  %271 = vmatprep.subr.mxu0 0.0
  %272 = vmatpush1.msra.mxu0 %v96
  %273 = vmatprep.subr.mxu0 0.0
  %274 = vmatpush1.msra.mxu0 %v97
  %275 = vmatprep.subr.mxu0 0.0
  %276 = vmatpush1.msra.mxu0 %v98
  %277 = vmatprep.subr.mxu0 0.0
  %278 = vmatpush1.msra.mxu0 %v99
  %279 = vmatprep.subr.mxu0 0.0
  %280 = vmatpush1.msra.mxu0 %v100
  %281 = vmatprep.subr.mxu0 0.0
  %282 = vmatpush1.msra.mxu0 %v101
  %283 = vmatprep.subr.mxu0 0.0
  %284 = vmatpush1.msra.mxu0 %v102
  %285 = vmatprep.subr.mxu0 0.0
  %286 = vmatpush1.msra.mxu0 %v103
  %287 = vmatprep.subr.mxu0 0.0
  %288 = vmatpush1.msra.mxu0 %v104
  %289 = vmatprep.subr.mxu0 0.0
  %290 = vmatpush1.msra.mxu0 %v105
  %291 = vmatprep.subr.mxu0 0.0
  %292 = vmatpush1.msra.mxu0 %v106
  %293 = vmatprep.subr.mxu0 0.0
  %294 = vmatpush1.msra.mxu0 %v107
  %295 = vmatprep.subr.mxu0 0.0
  %296 = vmatpush1.msra.mxu0 %v108
  %297 = vmatprep.subr.mxu0 0.0
  %298 = vmatpush1.msra.mxu0 %v109
  %299 = vmatprep.subr.mxu0 0.0
  %300 = vmatpush1.msra.mxu0 %v110
  %301 = vmatprep.subr.mxu0 0.0
  %302 = vmatpush1.msra.mxu0 %v111
  %303 = vmatprep.subr.mxu0 0.0
  %304 = vmatpush1.msra.mxu0 %v112
  %305 = vmatprep.subr.mxu0 0.0
  %306 = vmatpush1.msra.mxu0 %v113
  %307 = vmatprep.subr.mxu0 0.0
  %308 = vmatpush1.msra.mxu0 %v114
  %309 = vmatprep.subr.mxu0 0.0
  %310 = vmatpush1.msra.mxu0 %v115
  %311 = vmatprep.subr.mxu0 0.0
  %312 = vmatpush1.msra.mxu0 %v116
  %313 = vmatprep.subr.mxu0 0.0
  %314 = vmatpush1.msra.mxu0 %v117
  %315 = vmatprep.subr.mxu0 0.0
  %316 = vmatpush1.msra.mxu0 %v118
  %317 = vmatprep.subr.mxu0 0.0
  %318 = vmatpush1.msra.mxu0 %v119
  %319 = vmatprep.subr.mxu0 0.0
  %320 = vmatpush1.msra.mxu0 %v120
  %321 = vmatprep.subr.mxu0 0.0
  %322 = vmatpush1.msra.mxu0 %v121
  %323 = vmatprep.subr.mxu0 0.0
  %324 = vmatpush1.msra.mxu0 %v122
  %325 = vmatprep.subr.mxu0 0.0
  %326 = vmatpush1.msra.mxu0 %v123
  %327 = vmatprep.mubr.f32.mxu0 %v35
  %328 = vmatmul.mubr.f32.gmra.mrb[0].mxu0 %v34
  %v329 = vpop.f32.mrb[0].mxu0
  %v330 = vadd.f32 %v245, %v329
  %v331 = vpop.f32.mrb[0].mxu0
  %332 = vmatprep.mubr.f32.mxu0 %v42
  %333 = vmatmul.mubr.f32.gmra.mrb[0].mxu0 %v41
  %v334 = vpop.f32.mrb[0].mxu0
  %v335 = vadd.f32 %v250, %v334
  %v336 = vpop.f32.mrb[0].mxu0
  %337 = vmatprep.mubr.f32.mxu0 %v49
  %338 = vmatmul.mubr.f32.gmra.mrb[0].mxu0 %v48
  %v339 = vpop.f32.mrb[0].mxu0
  %v340 = vadd.f32 %v255, %v339
  %v341 = vpop.f32.mrb[0].mxu0
  %342 = vmatprep.mubr.f32.mxu0 %v56
  %343 = vmatmul.mubr.f32.gmra.mrb[0].mxu0 %v55
  %v344 = vpop.f32.mrb[0].mxu0
  %v345 = vadd.f32 %v260, %v344
  %v346 = vpop.f32.mrb[0].mxu0
  %347 = vdwg.mxu0
  %348 = vmatprep.subr.mxu0 0.0
  %349 = vmatpush1.msra.mxu0 %v124
  %350 = vmatprep.subr.mxu0 0.0
  %351 = vmatpush1.msra.mxu0 %v125
  %352 = vmatprep.subr.mxu0 0.0
  %353 = vmatpush1.msra.mxu0 %v126
  %354 = vmatprep.subr.mxu0 0.0
  %355 = vmatpush1.msra.mxu0 %v127
  %356 = vmatprep.subr.mxu0 0.0
  %357 = vmatpush1.msra.mxu0 %v128
  %358 = vmatprep.subr.mxu0 0.0
  %359 = vmatpush1.msra.mxu0 %v129
  %360 = vmatprep.subr.mxu0 0.0
  %361 = vmatpush1.msra.mxu0 %v130
  %362 = vmatprep.subr.mxu0 0.0
  %363 = vmatpush1.msra.mxu0 %v131
  %364 = vmatprep.subr.mxu0 0.0
  %365 = vmatpush1.msra.mxu0 %v132
  %366 = vmatprep.subr.mxu0 0.0
  %367 = vmatpush1.msra.mxu0 %v133
  %368 = vmatprep.subr.mxu0 0.0
  %369 = vmatpush1.msra.mxu0 %v134
  %370 = vmatprep.subr.mxu0 0.0
  %371 = vmatpush1.msra.mxu0 %v135
  %372 = vmatprep.subr.mxu0 0.0
  %373 = vmatpush1.msra.mxu0 %v136
  %374 = vmatprep.subr.mxu0 0.0
  %375 = vmatpush1.msra.mxu0 %v137
  %376 = vmatprep.subr.mxu0 0.0
  %377 = vmatpush1.msra.mxu0 %v138
  %378 = vmatprep.subr.mxu0 0.0
  %379 = vmatpush1.msra.mxu0 %v139
  %380 = vmatprep.subr.mxu0 0.0
  %381 = vmatpush1.msra.mxu0 %v140
  %382 = vmatprep.subr.mxu0 0.0
  %383 = vmatpush1.msra.mxu0 %v141
  %384 = vmatprep.subr.mxu0 0.0
  %385 = vmatpush1.msra.mxu0 %v142
  %386 = vmatprep.subr.mxu0 0.0
  %387 = vmatpush1.msra.mxu0 %v143
  %388 = vmatprep.subr.mxu0 0.0
  %389 = vmatpush1.msra.mxu0 %v144
  %390 = vmatprep.subr.mxu0 0.0
  %391 = vmatpush1.msra.mxu0 %v145
  %392 = vmatprep.subr.mxu0 0.0
  %393 = vmatpush1.msra.mxu0 %v146
  %394 = vmatprep.subr.mxu0 0.0
  %395 = vmatpush1.msra.mxu0 %v147
  %396 = vmatprep.subr.mxu0 0.0
  %397 = vmatpush1.msra.mxu0 %v148
  %398 = vmatprep.subr.mxu0 0.0
  %399 = vmatpush1.msra.mxu0 %v149
  %400 = vmatprep.subr.mxu0 0.0
  %401 = vmatpush1.msra.mxu0 %v150
  %402 = vmatprep.subr.mxu0 0.0
  %403 = vmatpush1.msra.mxu0 %v151
  %404 = vmatprep.subr.mxu0 0.0
  %405 = vmatpush1.msra.mxu0 %v152
  %406 = vmatprep.subr.mxu0 0.0
  %407 = vmatpush1.msra.mxu0 %v153
  %408 = vmatprep.subr.mxu0 0.0
  %409 = vmatpush1.msra.mxu0 %v154
  %410 = vmatprep.subr.mxu0 0.0
  %411 = vmatpush1.msra.mxu0 %v155
  %412 = vmatprep.mubr.f32.mxu0 %v37
  %413 = vmatmul.mubr.f32.gmra.mrb[0].mxu0 %v36
  %v414 = vpop.f32.mrb[0].mxu0
  %v415 = vadd.f32 %v330, %v414
  %v416 = vpop.f32.mrb[0].mxu0
  %417 = vmatprep.mubr.f32.mxu0 %v44
  %418 = vmatmul.mubr.f32.gmra.mrb[0].mxu0 %v43
  %v419 = vpop.f32.mrb[0].mxu0
  %v420 = vadd.f32 %v335, %v419
  %v421 = vpop.f32.mrb[0].mxu0
  %422 = vmatprep.mubr.f32.mxu0 %v51
  %423 = vmatmul.mubr.f32.gmra.mrb[0].mxu0 %v50
  %v424 = vpop.f32.mrb[0].mxu0
  %v425 = vadd.f32 %v340, %v424
  %v426 = vpop.f32.mrb[0].mxu0
  %427 = vmatprep.mubr.f32.mxu0 %v58
  %428 = vmatmul.mubr.f32.gmra.mrb[0].mxu0 %v57
  %v429 = vpop.f32.mrb[0].mxu0
  %v430 = vadd.f32 %v345, %v429
  %v431 = vpop.f32.mrb[0].mxu0
  %432 = vdwg.mxu0
  %433 = vmatprep.subr.mxu0 0.0
  %434 = vmatpush1.msra.mxu0 %v156
  %435 = vmatprep.subr.mxu0 0.0
  %436 = vmatpush1.msra.mxu0 %v157
  %437 = vmatprep.subr.mxu0 0.0
  %438 = vmatpush1.msra.mxu0 0.0
  %439 = vmatprep.subr.mxu0 0.0
  %440 = vmatpush1.msra.mxu0 0.0
  %441 = vmatprep.subr.mxu0 0.0
  %442 = vmatpush1.msra.mxu0 0.0
  %443 = vmatprep.subr.mxu0 0.0
  %444 = vmatpush1.msra.mxu0 0.0
  %445 = vmatprep.subr.mxu0 0.0
  %446 = vmatpush1.msra.mxu0 0.0
  %447 = vmatprep.subr.mxu0 0.0
  %448 = vmatpush1.msra.mxu0 0.0
  %449 = vmatprep.subr.mxu0 0.0
  %450 = vmatpush1.msra.mxu0 0.0
  %451 = vmatprep.subr.mxu0 0.0
  %452 = vmatpush1.msra.mxu0 0.0
  %453 = vmatprep.subr.mxu0 0.0
  %454 = vmatpush1.msra.mxu0 0.0
  %455 = vmatprep.subr.mxu0 0.0
  %456 = vmatpush1.msra.mxu0 0.0
  %457 = vmatprep.subr.mxu0 0.0
  %458 = vmatpush1.msra.mxu0 0.0
  %459 = vmatprep.subr.mxu0 0.0
  %460 = vmatpush1.msra.mxu0 0.0
  %461 = vmatprep.subr.mxu0 0.0
  %462 = vmatpush1.msra.mxu0 0.0
  %463 = vmatprep.subr.mxu0 0.0
  %464 = vmatpush1.msra.mxu0 0.0
  %465 = vmatprep.subr.mxu0 0.0
  %466 = vmatpush1.msra.mxu0 0.0
  %467 = vmatprep.subr.mxu0 0.0
  %468 = vmatpush1.msra.mxu0 0.0
  %469 = vmatprep.subr.mxu0 0.0
  %470 = vmatpush1.msra.mxu0 0.0
  %471 = vmatprep.subr.mxu0 0.0
  %472 = vmatpush1.msra.mxu0 0.0
  %473 = vmatprep.subr.mxu0 0.0
  %474 = vmatpush1.msra.mxu0 0.0
  %475 = vmatprep.subr.mxu0 0.0
  %476 = vmatpush1.msra.mxu0 0.0
  %477 = vmatprep.subr.mxu0 0.0
  %478 = vmatpush1.msra.mxu0 0.0
  %479 = vmatprep.subr.mxu0 0.0
  %480 = vmatpush1.msra.mxu0 0.0
  %481 = vmatprep.subr.mxu0 0.0
  %482 = vmatpush1.msra.mxu0 0.0
  %483 = vmatprep.subr.mxu0 0.0
  %484 = vmatpush1.msra.mxu0 0.0
  %485 = vmatprep.subr.mxu0 0.0
  %486 = vmatpush1.msra.mxu0 0.0
  %487 = vmatprep.subr.mxu0 0.0
  %488 = vmatpush1.msra.mxu0 0.0
  %489 = vmatprep.subr.mxu0 0.0
  %490 = vmatpush1.msra.mxu0 0.0
  %491 = vmatprep.subr.mxu0 0.0
  %492 = vmatpush1.msra.mxu0 0.0
  %493 = vmatprep.subr.mxu0 0.0
  %494 = vmatpush1.msra.mxu0 0.0
  %495 = vmatprep.subr.mxu0 0.0
  %496 = vmatpush1.msra.mxu0 0.0
  %497 = vmatprep.mubr.f32.mxu0 0.0
  %498 = vmatmul.mubr.f32.gmra.mrb[0].mxu0 %v167
  %v499 = vpop.f32.mrb[0].mxu0
  %v500 = vadd.f32 %v415, %v499
  %v501 = vpop.f32.mrb[0].mxu0
  %502 = vmatprep.mubr.f32.mxu0 0.0
  %503 = vmatmul.mubr.f32.gmra.mrb[0].mxu0 %v170
  %v504 = vpop.f32.mrb[0].mxu0
  %v505 = vadd.f32 %v420, %v504
  %v506 = vpop.f32.mrb[0].mxu0
  %507 = vmatprep.mubr.f32.mxu0 0.0
  %508 = vmatmul.mubr.f32.gmra.mrb[0].mxu0 %v173
  %v509 = vpop.f32.mrb[0].mxu0
  %v510 = vadd.f32 %v425, %v509
  %v511 = vpop.f32.mrb[0].mxu0
  %512 = vmatprep.mubr.f32.mxu0 0.0
  %513 = vmatmul.mubr.f32.gmra.mrb[0].mxu0 %v176
  %v514 = vpop.f32.mrb[0].mxu0
  %v515 = vadd.f32 %v430, %v514
  %v516 = vpop.f32.mrb[0].mxu0
  %517 = vdwg.mxu0
  %v518 = vmax.f32 %v500, 0.0
  %v519 = vmax.f32 %v505, 0.0
  %v520 = vmax.f32 %v510, 0.0
  %v521 = vmax.f32 %v515, 0.0
  %v522 = vld [vmem:[%s3] sm:$0xff]
  %v523 = vld [vmem:[%s3 + $0x8] sm:$0xff]
  %v524 = vld [vmem:[%s3 + $0x10] sm:$0xff]
  %v525 = vld [vmem:[%s3 + $0x18] sm:$0xff]
  %v526 = vld [vmem:[%s3 + $0x20] sm:$0xff]
  %v527 = vld [vmem:[%s3 + $0x28] sm:$0xff]
  %v528 = vld [vmem:[%s3 + $0x30] sm:$0xff]
  %v529 = vld [vmem:[%s3 + $0x38] sm:$0xff]
  %v530 = vld [vmem:[%s4] sm:$0x1]
  %v532 = vlaneseq
  %v533 = vshrl.u32 %v532, 7
  %v534 = vsub.s32 0, %v533
  %v535 = vrot.slane %v530, %v534
  %vm537 = vcmask 523264
  %v539 = vsel %vm537, %v518, 0
  %v542 = vsel %vm537, %v519, 0
  %v545 = vsel %vm537, %v520, 0
  %v548 = vsel %vm537, %v521, 0
  %550 = vmatprep.subr.mxu0 0.0
  %551 = vmatpush1.msra.mxu0 %v522
  %552 = vmatprep.subr.mxu0 0.0
  %553 = vmatpush1.msra.mxu0 %v523
  %554 = vmatprep.subr.mxu0 0.0
  %555 = vmatpush1.msra.mxu0 %v524
  %556 = vmatprep.subr.mxu0 0.0
  %557 = vmatpush1.msra.mxu0 %v525
  %558 = vmatprep.subr.mxu0 0.0
  %559 = vmatpush1.msra.mxu0 %v526
  %560 = vmatprep.subr.mxu0 0.0
  %561 = vmatpush1.msra.mxu0 %v527
  %562 = vmatprep.subr.mxu0 0.0
  %563 = vmatpush1.msra.mxu0 %v528
  %564 = vmatprep.subr.mxu0 0.0
  %565 = vmatpush1.msra.mxu0 %v529
  %566 = vmatprep.subr.mxu0 0.0
  %567 = vmatpush1.msra.mxu0 0.0
  %568 = vmatprep.subr.mxu0 0.0
  %569 = vmatpush1.msra.mxu0 0.0
  %570 = vmatprep.subr.mxu0 0.0
  %571 = vmatpush1.msra.mxu0 0.0
  %572 = vmatprep.subr.mxu0 0.0
  %573 = vmatpush1.msra.mxu0 0.0
  %574 = vmatprep.subr.mxu0 0.0
  %575 = vmatpush1.msra.mxu0 0.0
  %576 = vmatprep.subr.mxu0 0.0
  %577 = vmatpush1.msra.mxu0 0.0
  %578 = vmatprep.subr.mxu0 0.0
  %579 = vmatpush1.msra.mxu0 0.0
  %580 = vmatprep.subr.mxu0 0.0
  %581 = vmatpush1.msra.mxu0 0.0
  %582 = vmatprep.subr.mxu0 0.0
  %583 = vmatpush1.msra.mxu0 0.0
  %584 = vmatprep.subr.mxu0 0.0
  %585 = vmatpush1.msra.mxu0 0.0
  %586 = vmatprep.subr.mxu0 0.0
  %587 = vmatpush1.msra.mxu0 0.0
  %588 = vmatprep.subr.mxu0 0.0
  %589 = vmatpush1.msra.mxu0 0.0
  %590 = vmatprep.subr.mxu0 0.0
  %591 = vmatpush1.msra.mxu0 0.0
  %592 = vmatprep.subr.mxu0 0.0
  %593 = vmatpush1.msra.mxu0 0.0
  %594 = vmatprep.subr.mxu0 0.0
  %595 = vmatpush1.msra.mxu0 0.0
  %596 = vmatprep.subr.mxu0 0.0
  %597 = vmatpush1.msra.mxu0 0.0
  %598 = vmatprep.subr.mxu0 0.0
  %599 = vmatpush1.msra.mxu0 0.0
  %600 = vmatprep.subr.mxu0 0.0
  %601 = vmatpush1.msra.mxu0 0.0
  %602 = vmatprep.subr.mxu0 0.0
  %603 = vmatpush1.msra.mxu0 0.0
  %604 = vmatprep.subr.mxu0 0.0
  %605 = vmatpush1.msra.mxu0 0.0
  %606 = vmatprep.subr.mxu0 0.0
  %607 = vmatpush1.msra.mxu0 0.0
  %608 = vmatprep.subr.mxu0 0.0
  %609 = vmatpush1.msra.mxu0 0.0
  %610 = vmatprep.subr.mxu0 0.0
  %611 = vmatpush1.msra.mxu0 0.0
  %612 = vmatprep.subr.mxu0 0.0
  %613 = vmatpush1.msra.mxu0 0.0
  %614 = vmatprep.mubr.f32.mxu0 0.0
  %615 = vmatmul.mubr.f32.gmra.mrb[0].mxu0 %v539
  %v616 = vpop.f32.mrb[0].mxu0
  %v617 = vadd.f32 %v535, %v616
  %v618 = vpop.f32.mrb[0].mxu0
  %619 = vmatprep.mubr.f32.mxu0 0.0
  %620 = vmatmul.mubr.f32.gmra.mrb[0].mxu0 %v542
  %v621 = vpop.f32.mrb[0].mxu0
  %v622 = vadd.f32 %v535, %v621
  %v623 = vpop.f32.mrb[0].mxu0
  %624 = vmatprep.mubr.f32.mxu0 0.0
  %625 = vmatmul.mubr.f32.gmra.mrb[0].mxu0 %v545
  %v626 = vpop.f32.mrb[0].mxu0
  %v627 = vadd.f32 %v535, %v626
  %v628 = vpop.f32.mrb[0].mxu0
  %629 = vmatprep.mubr.f32.mxu0 0.0
  %630 = vmatmul.mubr.f32.gmra.mrb[0].mxu0 %v548
  %v631 = vpop.f32.mrb[0].mxu0
  %v632 = vadd.f32 %v535, %v631
  %v633 = vpop.f32.mrb[0].mxu0
  %634 = vdwg.mxu0
  %v635 = vmax.f32 %v617, 0.0
  %v636 = vmax.f32 %v622, 0.0
  %v637 = vmax.f32 %v627, 0.0
  %v638 = vmax.f32 %v632, 0.0
  %v639 = vld [vmem:[%s5] sm:$0xff]
  %v640 = vld [vmem:[%s5 + $0x8] sm:$0xff]
  %v641 = vld [vmem:[%s5 + $0x10] sm:$0xff]
  %v642 = vld [vmem:[%s5 + $0x18] sm:$0xff]
  %v643 = vld [vmem:[%s5 + $0x20] sm:$0xff]
  %v644 = vld [vmem:[%s5 + $0x28] sm:$0xff]
  %v645 = vld [vmem:[%s5 + $0x30] sm:$0xff]
  %v646 = vld [vmem:[%s5 + $0x38] sm:$0xff]
  %v647 = vld [vmem:[%s6] sm:$0x1]
  %v649 = vlaneseq
  %v650 = vshrl.u32 %v649, 7
  %v651 = vsub.s32 0, %v650
  %v652 = vrot.slane %v647, %v651
  %v655 = vsel %vm537, %v635, 0
  %v658 = vsel %vm537, %v636, 0
  %v661 = vsel %vm537, %v637, 0
  %v664 = vsel %vm537, %v638, 0
  %666 = vmatprep.subr.mxu0 0.0
  %667 = vmatpush1.msra.mxu0 %v639
  %668 = vmatprep.subr.mxu0 0.0
  %669 = vmatpush1.msra.mxu0 %v640
  %670 = vmatprep.subr.mxu0 0.0
  %671 = vmatpush1.msra.mxu0 %v641
  %672 = vmatprep.subr.mxu0 0.0
  %673 = vmatpush1.msra.mxu0 %v642
  %674 = vmatprep.subr.mxu0 0.0
  %675 = vmatpush1.msra.mxu0 %v643
  %676 = vmatprep.subr.mxu0 0.0
  %677 = vmatpush1.msra.mxu0 %v644
  %678 = vmatprep.subr.mxu0 0.0
  %679 = vmatpush1.msra.mxu0 %v645
  %680 = vmatprep.subr.mxu0 0.0
  %681 = vmatpush1.msra.mxu0 %v646
  %682 = vmatprep.subr.mxu0 0.0
  %683 = vmatpush1.msra.mxu0 0.0
  %684 = vmatprep.subr.mxu0 0.0
  %685 = vmatpush1.msra.mxu0 0.0
  %686 = vmatprep.subr.mxu0 0.0
  %687 = vmatpush1.msra.mxu0 0.0
  %688 = vmatprep.subr.mxu0 0.0
  %689 = vmatpush1.msra.mxu0 0.0
  %690 = vmatprep.subr.mxu0 0.0
  %691 = vmatpush1.msra.mxu0 0.0
  %692 = vmatprep.subr.mxu0 0.0
  %693 = vmatpush1.msra.mxu0 0.0
  %694 = vmatprep.subr.mxu0 0.0
  %695 = vmatpush1.msra.mxu0 0.0
  %696 = vmatprep.subr.mxu0 0.0
  %697 = vmatpush1.msra.mxu0 0.0
  %698 = vmatprep.subr.mxu0 0.0
  %699 = vmatpush1.msra.mxu0 0.0
  %700 = vmatprep.subr.mxu0 0.0
  %701 = vmatpush1.msra.mxu0 0.0
  %702 = vmatprep.subr.mxu0 0.0
  %703 = vmatpush1.msra.mxu0 0.0
  %704 = vmatprep.subr.mxu0 0.0
  %705 = vmatpush1.msra.mxu0 0.0
  %706 = vmatprep.subr.mxu0 0.0
  %707 = vmatpush1.msra.mxu0 0.0
  %708 = vmatprep.subr.mxu0 0.0
  %709 = vmatpush1.msra.mxu0 0.0
  %710 = vmatprep.subr.mxu0 0.0
  %711 = vmatpush1.msra.mxu0 0.0
  %712 = vmatprep.subr.mxu0 0.0
  %713 = vmatpush1.msra.mxu0 0.0
  %714 = vmatprep.subr.mxu0 0.0
  %715 = vmatpush1.msra.mxu0 0.0
  %716 = vmatprep.subr.mxu0 0.0
  %717 = vmatpush1.msra.mxu0 0.0
  %718 = vmatprep.subr.mxu0 0.0
  %719 = vmatpush1.msra.mxu0 0.0
  %720 = vmatprep.subr.mxu0 0.0
  %721 = vmatpush1.msra.mxu0 0.0
  %722 = vmatprep.subr.mxu0 0.0
  %723 = vmatpush1.msra.mxu0 0.0
  %724 = vmatprep.subr.mxu0 0.0
  %725 = vmatpush1.msra.mxu0 0.0
  %726 = vmatprep.subr.mxu0 0.0
  %727 = vmatpush1.msra.mxu0 0.0
  %728 = vmatprep.subr.mxu0 0.0
  %729 = vmatpush1.msra.mxu0 0.0
  %730 = vmatprep.mubr.f32.mxu0 0.0
  %731 = vmatmul.mubr.f32.gmra.mrb[0].mxu0 %v655
  %v732 = vpop.f32.mrb[0].mxu0
  %v733 = vadd.f32 %v652, %v732
  %v734 = vpop.f32.mrb[0].mxu0
  %735 = vmatprep.mubr.f32.mxu0 0.0
  %736 = vmatmul.mubr.f32.gmra.mrb[0].mxu0 %v658
  %v737 = vpop.f32.mrb[0].mxu0
  %v738 = vadd.f32 %v652, %v737
  %v739 = vpop.f32.mrb[0].mxu0
  %740 = vmatprep.mubr.f32.mxu0 0.0
  %741 = vmatmul.mubr.f32.gmra.mrb[0].mxu0 %v661
  %v742 = vpop.f32.mrb[0].mxu0
  %v743 = vadd.f32 %v652, %v742
  %v744 = vpop.f32.mrb[0].mxu0
  %745 = vmatprep.mubr.f32.mxu0 0.0
  %746 = vmatmul.mubr.f32.gmra.mrb[0].mxu0 %v664
  %v747 = vpop.f32.mrb[0].mxu0
  %v748 = vadd.f32 %v652, %v747
  %v749 = vpop.f32.mrb[0].mxu0
  %750 = vdwg.mxu0
  %v751 = vmax.f32 %v733, 0.0
  %v752 = vmax.f32 %v738, 0.0
  %v753 = vmax.f32 %v743, 0.0
  %v754 = vmax.f32 %v748, 0.0
  %v755 = vld [vmem:[%s7] sm:$0xff]
  %v756 = vld [vmem:[%s7 + $0x8] sm:$0xff]
  %v757 = vld [vmem:[%s7 + $0x10] sm:$0xff]
  %v758 = vld [vmem:[%s7 + $0x18] sm:$0xff]
  %v759 = vld [vmem:[%s7 + $0x20] sm:$0xff]
  %v760 = vld [vmem:[%s7 + $0x28] sm:$0xff]
  %v761 = vld [vmem:[%s7 + $0x30] sm:$0xff]
  %v762 = vld [vmem:[%s7 + $0x38] sm:$0xff]
  %v763 = vld [vmem:[%s8] sm:$0x1]
  %v765 = vlaneseq
  %v766 = vshrl.u32 %v765, 7
  %v767 = vsub.s32 0, %v766
  %v768 = vrot.slane %v763, %v767
  %v771 = vsel %vm537, %v751, 0
  %v774 = vsel %vm537, %v752, 0
  %v777 = vsel %vm537, %v753, 0
  %v780 = vsel %vm537, %v754, 0
  %782 = vmatprep.subr.mxu0 0.0
  %783 = vmatpush1.msra.mxu0 %v755
  %784 = vmatprep.subr.mxu0 0.0
  %785 = vmatpush1.msra.mxu0 %v756
  %786 = vmatprep.subr.mxu0 0.0
  %787 = vmatpush1.msra.mxu0 %v757
  %788 = vmatprep.subr.mxu0 0.0
  %789 = vmatpush1.msra.mxu0 %v758
  %790 = vmatprep.subr.mxu0 0.0
  %791 = vmatpush1.msra.mxu0 %v759
  %792 = vmatprep.subr.mxu0 0.0
  %793 = vmatpush1.msra.mxu0 %v760
  %794 = vmatprep.subr.mxu0 0.0
  %795 = vmatpush1.msra.mxu0 %v761
  %796 = vmatprep.subr.mxu0 0.0
  %797 = vmatpush1.msra.mxu0 %v762
  %798 = vmatprep.subr.mxu0 0.0
  %799 = vmatpush1.msra.mxu0 0.0
  %800 = vmatprep.subr.mxu0 0.0
  %801 = vmatpush1.msra.mxu0 0.0
  %802 = vmatprep.subr.mxu0 0.0
  %803 = vmatpush1.msra.mxu0 0.0
  %804 = vmatprep.subr.mxu0 0.0
  %805 = vmatpush1.msra.mxu0 0.0
  %806 = vmatprep.subr.mxu0 0.0
  %807 = vmatpush1.msra.mxu0 0.0
  %808 = vmatprep.subr.mxu0 0.0
  %809 = vmatpush1.msra.mxu0 0.0
  %810 = vmatprep.subr.mxu0 0.0
  %811 = vmatpush1.msra.mxu0 0.0
  %812 = vmatprep.subr.mxu0 0.0
  %813 = vmatpush1.msra.mxu0 0.0
  %814 = vmatprep.subr.mxu0 0.0
  %815 = vmatpush1.msra.mxu0 0.0
  %816 = vmatprep.subr.mxu0 0.0
  %817 = vmatpush1.msra.mxu0 0.0
  %818 = vmatprep.subr.mxu0 0.0
  %819 = vmatpush1.msra.mxu0 0.0
  %820 = vmatprep.subr.mxu0 0.0
  %821 = vmatpush1.msra.mxu0 0.0
  %822 = vmatprep.subr.mxu0 0.0
  %823 = vmatpush1.msra.mxu0 0.0
  %824 = vmatprep.subr.mxu0 0.0
  %825 = vmatpush1.msra.mxu0 0.0
  %826 = vmatprep.subr.mxu0 0.0
  %827 = vmatpush1.msra.mxu0 0.0
  %828 = vmatprep.subr.mxu0 0.0
  %829 = vmatpush1.msra.mxu0 0.0
  %830 = vmatprep.subr.mxu0 0.0
  %831 = vmatpush1.msra.mxu0 0.0
  %832 = vmatprep.subr.mxu0 0.0
  %833 = vmatpush1.msra.mxu0 0.0
  %834 = vmatprep.subr.mxu0 0.0
  %835 = vmatpush1.msra.mxu0 0.0
  %836 = vmatprep.subr.mxu0 0.0
  %837 = vmatpush1.msra.mxu0 0.0
  %838 = vmatprep.subr.mxu0 0.0
  %839 = vmatpush1.msra.mxu0 0.0
  %840 = vmatprep.subr.mxu0 0.0
  %841 = vmatpush1.msra.mxu0 0.0
  %842 = vmatprep.subr.mxu0 0.0
  %843 = vmatpush1.msra.mxu0 0.0
  %844 = vmatprep.subr.mxu0 0.0
  %845 = vmatpush1.msra.mxu0 0.0
  %846 = vmatprep.mubr.f32.mxu0 0.0
  %847 = vmatmul.mubr.f32.gmra.mrb[0].mxu0 %v771
  %v848 = vpop.f32.mrb[0].mxu0
  %v849 = vadd.f32 %v768, %v848
  %v850 = vpop.f32.mrb[0].mxu0
  %851 = vmatprep.mubr.f32.mxu0 0.0
  %852 = vmatmul.mubr.f32.gmra.mrb[0].mxu0 %v774
  %v853 = vpop.f32.mrb[0].mxu0
  %v854 = vadd.f32 %v768, %v853
  %v855 = vpop.f32.mrb[0].mxu0
  %856 = vmatprep.mubr.f32.mxu0 0.0
  %857 = vmatmul.mubr.f32.gmra.mrb[0].mxu0 %v777
  %v858 = vpop.f32.mrb[0].mxu0
  %v859 = vadd.f32 %v768, %v858
  %v860 = vpop.f32.mrb[0].mxu0
  %861 = vmatprep.mubr.f32.mxu0 0.0
  %862 = vmatmul.mubr.f32.gmra.mrb[0].mxu0 %v780
  %v863 = vpop.f32.mrb[0].mxu0
  %v864 = vadd.f32 %v768, %v863
  %v865 = vpop.f32.mrb[0].mxu0
  %866 = vdwg.mxu0
  %867 = vmax.xlane.f32.xlu0 %v849
  %v868 = vpop.xlane.xlu0 %867
  %869 = vmax.xlane.f32.xlu0 %v854
  %v870 = vpop.xlane.xlu0 %869
  %871 = vmax.xlane.f32.xlu0 %v859
  %v872 = vpop.xlane.xlu0 %871
  %873 = vmax.xlane.f32.xlu0 %v864
  %v874 = vpop.xlane.xlu0 %873
  %v875 = vsub.f32 %v849, %v868
  %v876 = vsub.f32 %v854, %v870
  %v877 = vsub.f32 %v859, %v872
  %v878 = vsub.f32 %v864, %v874
  %v879 = vmul.f32 %v875, 1.442695
  %v880 = vpow.pop %v879
  %v881 = vmul.f32 %v876, 1.442695
  %v882 = vpow.pop %v881
  %v883 = vmul.f32 %v877, 1.442695
  %v884 = vpow.pop %v883
  %v885 = vmul.f32 %v878, 1.442695
  %v886 = vpow.pop %v885
  %887 = vadd.xlane.f32.xlu0 %v880
  %v888 = vpop.xlane.xlu0 %887
  %889 = vadd.xlane.f32.xlu0 %v882
  %v890 = vpop.xlane.xlu0 %889
  %891 = vadd.xlane.f32.xlu0 %v884
  %v892 = vpop.xlane.xlu0 %891
  %893 = vadd.xlane.f32.xlu0 %v886
  %v894 = vpop.xlane.xlu0 %893
  %v895 = vlog2.pop %v888
  %v896 = vmul.f32 %v895, 0.6931472
  %v897 = vlog2.pop %v890
  %v898 = vmul.f32 %v897, 0.6931472
  %v899 = vlog2.pop %v892
  %v900 = vmul.f32 %v899, 0.6931472
  %v901 = vlog2.pop %v894
  %v902 = vmul.f32 %v901, 0.6931472
  %v903 = vsub.f32 %v875, %v896
  %v904 = vsub.f32 %v876, %v898
  %v905 = vsub.f32 %v877, %v900
  %v906 = vsub.f32 %v878, %v902
  %907 = vst [vmem:[%s9] sm:$0xff] %v903
  %908 = vst [vmem:[%s9 + $0x8] sm:$0xff] %v904
  %909 = vst [vmem:[%s9 + $0x10] sm:$0xff] %v905
  %910 = vst [vmem:[%s9 + $0x18] sm:$0xff] %v906
  // Predicated region
  $region38: #{net_forward.1} parent=0 // pred_check
    _
  $region39: #{net_forward.1} parent=0 // pred_check_branch
    %912 = sbr.rel (0) target = $region41
  $region40: #{net_forward.1} parent=0 // pred_region
    _
  $region41: #{net_forward.1} parent=0 // pred_fallthru
    _
  // Predicated region
  $region42: #{net_forward.1} parent=0 // pred_check
    _
  $region43: #{net_forward.1} parent=0 // pred_check_branch
    %914 = sbr.rel (0) target = $region45
  $region44: #{net_forward.1} parent=0 // pred_region
    _
  $region45: #{net_forward.1} parent=0 // pred_fallthru
    _

</llo_original>
